<compile_context>
chip_gen: v5e
topology: v5e:2x2
jax: 0.10.0
libtpu: 0.0.40
codegen_flags: <defaults>
</compile_context>

<pallas_src>
from typing import List

import numpy as np
import jax
import jax.numpy as jnp
from jax.experimental import pallas as pl
from jax.experimental.pallas import tpu as pltpu


LANE = 128                       # pad all layer widths to a multiple of the lane width
_MIB = 1 << 20
_WEIGHT_VMEM_BUDGET = 40 * _MIB  # conservative per-call resident-weight budget (fits v7x/v5e)
_VMEM_LIMIT_FLOOR = 16 * _MIB
_VMEM_LIMIT_CAP = 64 * _MIB

# Flipped to False at runtime if this jax build rejects single-buffered weight BlockSpecs.
_SINGLE_BUFFER_WEIGHTS_OK = True


def _round_up(n: int, m: int) -> int:
    return ((n + m - 1) // m) * m


# ---------------------------------------------------------------------------
# Activation helper (trace-time dispatch; lowers to VPU/EUP ops)
# ---------------------------------------------------------------------------
def _apply_activation(y, activation: str):
    if activation == "tanh":
        return jnp.tanh(y)
    if activation == "relu":
        return jnp.maximum(y, 0.0)
    if activation == "swish":
        return y * jax.nn.sigmoid(y)
    if activation == "sigmoid":
        return jax.nn.sigmoid(y)
    raise ValueError(f"unknown activation {activation}")


# ---------------------------------------------------------------------------
# Fused kernel over a chunk of layers.
# Ref order: x, w0, b0, w1, b1, ..., w_{L-1}, b_{L-1}, out
# ---------------------------------------------------------------------------
def _make_fused_kernel(n_layers, activation, activate_flags, dot_dtype):
    def kernel(*refs):
        x_ref = refs[0]
        o_ref = refs[1 + 2 * n_layers]
        y = x_ref[...].astype(dot_dtype)          # MXU operand dtype (bf16 by default)
        z = None
        for li in range(n_layers):
            w_ref = refs[1 + 2 * li]
            b_ref = refs[2 + 2 * li]
            # MXU matmul in dot_dtype with f32 accumulation.
            z = jnp.dot(y, w_ref[...], preferred_element_type=jnp.float32)
            z = z + b_ref[...].astype(jnp.float32)   # (1, Dout) broadcast VPU add in f32
            if activate_flags[li]:
                # tanh/sigmoid/swish run on the single EUP slot; for narrow layers the EUP,
                # not the MXU, is the binding VLIW slot (relu stays on the 4 VPU slots).
                z = _apply_activation(z, activation)
            # Dropout follows each inner activation; identity in eval mode.
            # TODO(synk): training-mode stochastic dropout via pltpu.prng_seed /
            #             pltpu.prng_random_bits if a train-mode baseline is needed.
            if li < n_layers - 1:
                y = z.astype(dot_dtype)
        o_ref[...] = z.astype(o_ref.dtype)          # lane-dense store (Dout padded to 128)

    return kernel


def _choose_batch_tile(B: int, batch_tile: int) -> int:
    if B <= 128:
        return B            # single block; block dim == full array dim (no (8,128) issue)
    # Ensure >= 2 grid steps so v7x's 2 TensorCores both get work on the parallel batch axis.
    tb = min(batch_tile, _round_up(-(-B // 2), 8))
    return max(8, _round_up(tb, 8))


def _fused_chunk_forward(x, layer_params, activation, activate_flags, dot_dtype,
                         out_dtype, batch_tile):
    B, Din = x.shape
    n_layers = len(layer_params)
    dout_final = layer_params[-1][0].shape[1]
    TB = _choose_batch_tile(B, batch_tile)
    grid = (pl.cdiv(B, TB),)   # ragged tail handled by Pallas's masked edge block (no jnp.pad)

    def build(single_buffer_weights: bool):
        w_kwargs = dict(pipeline_mode=pl.Buffered(1)) if single_buffer_weights else {}
        in_specs = [pl.BlockSpec((TB, Din), lambda i: (i, 0))]
        for w, b in layer_params:
            din_l, dout_l = w.shape
            # Constant index_map -> weights DMA'd once, resident in VMEM across the grid.
            in_specs.append(pl.BlockSpec((din_l, dout_l), lambda i: (0, 0), **w_kwargs))
            in_specs.append(pl.BlockSpec((1, dout_l), lambda i: (0, 0), **w_kwargs))
        out_spec = pl.BlockSpec((TB, dout_final), lambda i: (i, 0))

        # Explicit VMEM limit derived from the resident footprint (+ headroom).
        wbuf = 1 if single_buffer_weights else 2
        weight_bytes = sum(
            w.size * w.dtype.itemsize + 8 * b.shape[1] * b.dtype.itemsize
            for w, b in layer_params
        )
        max_width = max(max(w.shape[1] for w, _ in layer_params), Din)
        est = (
            2 * TB * Din * x.dtype.itemsize                       # double-buffered input tile
            + 2 * TB * dout_final * np.dtype(out_dtype).itemsize  # double-buffered output tile
            + wbuf * weight_bytes                                 # resident weights/biases
            + 4 * TB * max_width * 4                              # f32 intermediates headroom
        )
        vmem_limit = int(max(_VMEM_LIMIT_FLOOR,
                             min(_VMEM_LIMIT_CAP, est * 5 // 4 + 2 * _MIB)))

        # Advisory cost estimate so XLA schedules the custom call sensibly.
        flops = 0
        transcendentals = 0
        for li, (w, _) in enumerate(layer_params):
            din_l, dout_l = w.shape
            flops += 2 * B * din_l * dout_l
            if activate_flags[li] and activation != "relu":
                transcendentals += B * dout_l
        bytes_accessed = (
            x.size * x.dtype.itemsize
            + sum(w.size * w.dtype.itemsize + b.size * b.dtype.itemsize
                  for w, b in layer_params)
            + B * dout_final * np.dtype(out_dtype).itemsize
        )

        kernel = _make_fused_kernel(n_layers, activation, activate_flags, dot_dtype)
        return pl.pallas_call(
            kernel,
            out_shape=jax.ShapeDtypeStruct((B, dout_final), out_dtype),
            grid=grid,
            in_specs=in_specs,
            out_specs=out_spec,
            compiler_params=pltpu.CompilerParams(
                dimension_semantics=("parallel",),   # batch axis shards across TCs on v7x
                vmem_limit_bytes=vmem_limit,
            ),
            cost_estimate=pl.CostEstimate(
                flops=int(flops),
                transcendentals=int(transcendentals),
                bytes_accessed=int(bytes_accessed),
            ),
        )

    flat_inputs = [x]
    for w, b in layer_params:
        flat_inputs.extend((w, b))

    global _SINGLE_BUFFER_WEIGHTS_OK
    if _SINGLE_BUFFER_WEIGHTS_OK:
        try:
            return build(True)(*flat_inputs)
        except Exception:
            _SINGLE_BUFFER_WEIGHTS_OK = False   # fall back to default double buffering
    return build(False)(*flat_inputs)


def mlp_fused_forward(x, params, activation, activate_last_layer, *,
                      dot_dtype=jnp.bfloat16, batch_tile=512):
    """Run the MLP as (usually) one fused pallas_call; chunk only if weights exceed VMEM."""
    n_layers = len(params)
    activate_flags = [li < n_layers - 1 or activate_last_layer for li in range(n_layers)]

    # Greedily group layers into fused chunks whose resident weights fit the VMEM budget.
    # TODO(synk): K/N-tile a single layer whose weights alone exceed the budget.
    chunks, cur, cur_bytes = [], [], 0
    for li, (w, b) in enumerate(params):
        lb = w.size * w.dtype.itemsize + b.size * b.dtype.itemsize
        if cur and cur_bytes + lb > _WEIGHT_VMEM_BUDGET:
            chunks.append(cur)
            cur, cur_bytes = [], 0
        cur.append(li)
        cur_bytes += lb
    if cur:
        chunks.append(cur)

    y = x
    for ci, layer_ids in enumerate(chunks):
        is_last_chunk = ci == len(chunks) - 1
        layer_params = [params[li] for li in layer_ids]
        flags = [activate_flags[li] for li in layer_ids]
        # Non-final chunk outputs round-trip HBM in dot_dtype -- identical rounding to the
        # fully-fused path, which also casts activations to dot_dtype before the next dot.
        out_dtype = jnp.float32 if is_last_chunk else dot_dtype
        y = _fused_chunk_forward(y, layer_params, activation, flags, dot_dtype,
                                 out_dtype, batch_tile)
    return y


# ---------------------------------------------------------------------------
# MLP module (parameters built deterministically in-script)
# ---------------------------------------------------------------------------
class MLPPallas:
    def __init__(
        self,
        in_features: int,
        inner_layers_sizes: List[int],
        activation: str = "tanh",
        dropout_rate: float = 0.17,
        activate_last_layer: bool = False,
        key: jax.Array = None,
        dot_dtype=jnp.bfloat16,    # MXU operand dtype; accumulation stays f32
        batch_tile: int = 512,     # sweep {128, 256, 512} per dtype on real shapes
    ):
        assert activation in ["tanh", "relu", "swish", "sigmoid"]
        self.activation = activation
        self.dropout_rate = dropout_rate      # eval mode -> identity
        self.activate_last_layer = activate_last_layer
        self.dot_dtype = dot_dtype
        self.batch_tile = batch_tile

        dims_real = [in_features] + list(inner_layers_sizes) + [1]
        # Pad hidden widths and the final Dout=1 to the 128-lane width. Exact because the
        # padded rows of each subsequent weight matrix are zero.
        dims_pad = [in_features] + [_round_up(d, LANE) for d in dims_real[1:]]
        # TODO(synk): optionally zero-pad in_features (and x) at data-prep time if the real
        #             input width is large and badly lane-aligned.
        # TODO(synk): fp8 weight path (per-layer scale) for v7x inference to quarter the
        #             resident-weight VMEM footprint.

        self.params = []       # padded, kernel-facing (w [Din_p, Dout_p] dot_dtype, b f32)
        self.real_params = []  # unpadded, for the pure-JAX reference
        k = key if key is not None else jax.random.PRNGKey(0)
        for li in range(len(dims_real) - 1):
            din_r, dout_r = dims_real[li], dims_real[li + 1]
            din_p, dout_p = dims_pad[li], dims_pad[li + 1]
            k, kw, kb = jax.random.split(k, 3)
            # Deterministic init mimicking nn.Linear default (uniform ~ 1/sqrt(fan_in)).
            bound = 1.0 / float(np.sqrt(din_r))
            w_real = jax.random.uniform(kw, (din_r, dout_r), jnp.float32, -bound, bound)
            b_real = jax.random.uniform(kb, (1, dout_r), jnp.float32, -bound, bound)
            w_q = w_real.astype(dot_dtype)
            w_pad = jnp.zeros((din_p, dout_p), dot_dtype).at[:din_r, :dout_r].set(w_q)
            b_pad = jnp.zeros((1, dout_p), jnp.float32).at[:, :dout_r].set(b_real)
            self.params.append((w_pad, b_pad))
            self.real_params.append((w_q, b_real))

    def __call__(self, x: jax.Array) -> jax.Array:
        out = mlp_fused_forward(
            x, self.params, self.activation, self.activate_last_layer,
            dot_dtype=self.dot_dtype, batch_tile=self.batch_tile,
        )
        return out[:, :1]   # slice the single real output column (store was lane-dense)


# ---------------------------------------------------------------------------
# Pure-JAX reference with matching precision (same dot_dtype casts, f32 accumulate)
# ---------------------------------------------------------------------------
def mlp_ref(x, real_params, activation, activate_last_layer, dot_dtype):
    n = len(real_params)
    y = x
    z = None
    for i, (w, b) in enumerate(real_params):
        z = jnp.dot(y.astype(dot_dtype), w.astype(dot_dtype),
                    preferred_element_type=jnp.float32) + b.astype(jnp.float32)
        if i < n - 1 or activate_last_layer:
            z = _apply_activation(z, activation)
        y = z
    return z


if __name__ == "__main__":
    key = jax.random.PRNGKey(0)
    kx, kp = jax.random.split(key)

    batch, in_features = 8, 16
    inner_layers_sizes = [32, 32]

    x = jax.random.normal(kx, (batch, in_features), jnp.float32)

    # Default bf16-MXU path.
    model = MLPPallas(
        in_features=in_features,
        inner_layers_sizes=inner_layers_sizes,
        activation="tanh",
        dropout_rate=0.17,
        activate_last_layer=False,
        key=kp,
        dot_dtype=jnp.bfloat16,
    )
    out = jax.block_until_ready(model(x))
    ref = mlp_ref(x, model.real_params, "tanh", False, jnp.bfloat16)
    assert out.shape == (batch, 1), out.shape
    assert bool(jnp.all(jnp.isfinite(out)))
    assert jnp.allclose(out, ref, atol=1e-2, rtol=1e-2), (
        f"bf16 max err {jnp.max(jnp.abs(out - ref))}"
    )

    # f32 path: checks the padded/fused structure itself is numerically exact.
    model_f32 = MLPPallas(
        in_features=in_features,
        inner_layers_sizes=inner_layers_sizes,
        activation="tanh",
        dropout_rate=0.17,
        activate_last_layer=False,
        key=kp,
        dot_dtype=jnp.float32,
    )
    out32 = jax.block_until_ready(model_f32(x))
    ref32 = mlp_ref(x, model_f32.real_params, "tanh", False, jnp.float32)
    assert out32.shape == (batch, 1), out32.shape
    assert jnp.allclose(out32, ref32, atol=1e-4, rtol=1e-4), (
        f"f32 max err {jnp.max(jnp.abs(out32 - ref32))}"
    )

    print("KERNEL_OK")
</pallas_src>

<mosaic_0001>
module attributes {stable_mosaic.version = 11 : i64} {
  func.func @kernel(%arg0: i32, %arg1: memref<8x16xf32, #tpu.memory_space<vmem>>, %arg2: memref<16x128xbf16, #tpu.memory_space<vmem>>, %arg3: memref<1x128xf32, #tpu.memory_space<vmem>>, %arg4: memref<128x128xbf16, #tpu.memory_space<vmem>>, %arg5: memref<1x128xf32, #tpu.memory_space<vmem>>, %arg6: memref<128x128xbf16, #tpu.memory_space<vmem>>, %arg7: memref<1x128xf32, #tpu.memory_space<vmem>>, %arg8: memref<8x128xf32, #tpu.memory_space<vmem>>) attributes {dimension_semantics = [#tpu.dimension_semantics<parallel>], iteration_bounds = array<i64: 1>, scalar_prefetch = 0 : i64, scratch_operands = 0 : i64, tpu.core_type = #tpu.core_type<tc>, window_params = [{transform_indices = @transform_0, window_bounds = array<i64: 8, 16>}, {pipeline_mode = #tpu.pipeline_mode<synchronous>, transform_indices = @transform_1, window_bounds = array<i64: 16, 128>}, {pipeline_mode = #tpu.pipeline_mode<synchronous>, transform_indices = @transform_2, window_bounds = array<i64: 1, 128>}, {pipeline_mode = #tpu.pipeline_mode<synchronous>, transform_indices = @transform_3, window_bounds = array<i64: 128, 128>}, {pipeline_mode = #tpu.pipeline_mode<synchronous>, transform_indices = @transform_4, window_bounds = array<i64: 1, 128>}, {pipeline_mode = #tpu.pipeline_mode<synchronous>, transform_indices = @transform_5, window_bounds = array<i64: 128, 128>}, {pipeline_mode = #tpu.pipeline_mode<synchronous>, transform_indices = @transform_6, window_bounds = array<i64: 1, 128>}, {transform_indices = @transform_7, window_bounds = array<i64: 8, 128>}]} {
    %c0 = arith.constant 0 : index
    %c0_0 = arith.constant 0 : index
    %0 = vector.load %arg1[%c0, %c0_0] : memref<8x16xf32, #tpu.memory_space<vmem>>, vector<8x16xf32>
    %1 = arith.truncf %0 : vector<8x16xf32> to vector<8x16xbf16>
    %c0_1 = arith.constant 0 : index
    %c0_2 = arith.constant 0 : index
    %2 = vector.load %arg2[%c0_1, %c0_2] : memref<16x128xbf16, #tpu.memory_space<vmem>>, vector<16x128xbf16>
    %cst = arith.constant dense<0.000000e+00> : vector<8x128xf32>
    %3 = tpu.matmul %1, %2, %cst {dimension_numbers = #tpu.dot_dimension_numbers<[1], [0], [0], [1], [0, 0, 1, 1], [], []>} : vector<8x16xbf16>, vector<16x128xbf16>, vector<8x128xf32> -> vector<8x128xf32>
    %c0_3 = arith.constant 0 : index
    %c0_4 = arith.constant 0 : index
    %4 = vector.load %arg3[%c0_3, %c0_4] : memref<1x128xf32, #tpu.memory_space<vmem>>, vector<1x128xf32>
    %5 = vector.broadcast %4 : vector<1x128xf32> to vector<8x128xf32>
    %6 = arith.addf %3, %5 : vector<8x128xf32>
    %7 = math.tanh %6 : vector<8x128xf32>
    %8 = arith.truncf %7 : vector<8x128xf32> to vector<8x128xbf16>
    %c0_5 = arith.constant 0 : index
    %c0_6 = arith.constant 0 : index
    %9 = vector.load %arg4[%c0_5, %c0_6] : memref<128x128xbf16, #tpu.memory_space<vmem>>, vector<128x128xbf16>
    %cst_7 = arith.constant dense<0.000000e+00> : vector<8x128xf32>
    %10 = tpu.matmul %8, %9, %cst_7 {dimension_numbers = #tpu.dot_dimension_numbers<[1], [0], [0], [1], [0, 0, 1, 1], [], []>} : vector<8x128xbf16>, vector<128x128xbf16>, vector<8x128xf32> -> vector<8x128xf32>
    %c0_8 = arith.constant 0 : index
    %c0_9 = arith.constant 0 : index
    %11 = vector.load %arg5[%c0_8, %c0_9] : memref<1x128xf32, #tpu.memory_space<vmem>>, vector<1x128xf32>
    %12 = vector.broadcast %11 : vector<1x128xf32> to vector<8x128xf32>
    %13 = arith.addf %10, %12 : vector<8x128xf32>
    %14 = math.tanh %13 : vector<8x128xf32>
    %15 = arith.truncf %14 : vector<8x128xf32> to vector<8x128xbf16>
    %c0_10 = arith.constant 0 : index
    %c0_11 = arith.constant 0 : index
    %16 = vector.load %arg6[%c0_10, %c0_11] : memref<128x128xbf16, #tpu.memory_space<vmem>>, vector<128x128xbf16>
    %cst_12 = arith.constant dense<0.000000e+00> : vector<8x128xf32>
    %17 = tpu.matmul %15, %16, %cst_12 {dimension_numbers = #tpu.dot_dimension_numbers<[1], [0], [0], [1], [0, 0, 1, 1], [], []>} : vector<8x128xbf16>, vector<128x128xbf16>, vector<8x128xf32> -> vector<8x128xf32>
    %c0_13 = arith.constant 0 : index
    %c0_14 = arith.constant 0 : index
    %18 = vector.load %arg7[%c0_13, %c0_14] : memref<1x128xf32, #tpu.memory_space<vmem>>, vector<1x128xf32>
    %19 = vector.broadcast %18 : vector<1x128xf32> to vector<8x128xf32>
    %20 = arith.addf %17, %19 : vector<8x128xf32>
    %c0_15 = arith.constant 0 : index
    %c0_16 = arith.constant 0 : index
    %21 = vector.load %arg8[%c0_15, %c0_16] : memref<8x128xf32, #tpu.memory_space<vmem>>, vector<8x128xf32>
    tpu.vector_store %arg8[%c0_15, %c0_16], %20 {strides = array<i32>} : memref<8x128xf32, #tpu.memory_space<vmem>>, vector<8x128xf32>,
    return
  }
  func.func @transform_0(%arg0: i32) -> (i32, i32) {
    %c0_i32 = arith.constant 0 : i32
    %c0_i32_0 = arith.constant 0 : i32
    return %arg0, %c0_i32 : i32, i32
  }
  func.func @transform_1(%arg0: i32) -> (i32, i32) {
    %c0_i32 = arith.constant 0 : i32
    %c0_i32_0 = arith.constant 0 : i32
    %c0_i32_1 = arith.constant 0 : i32
    return %c0_i32, %c0_i32_0 : i32, i32
  }
  func.func @transform_2(%arg0: i32) -> (i32, i32) {
    %c0_i32 = arith.constant 0 : i32
    %c0_i32_0 = arith.constant 0 : i32
    %c0_i32_1 = arith.constant 0 : i32
    return %c0_i32, %c0_i32_0 : i32, i32
  }
  func.func @transform_3(%arg0: i32) -> (i32, i32) {
    %c0_i32 = arith.constant 0 : i32
    %c0_i32_0 = arith.constant 0 : i32
    %c0_i32_1 = arith.constant 0 : i32
    return %c0_i32, %c0_i32_0 : i32, i32
  }
  func.func @transform_4(%arg0: i32) -> (i32, i32) {
    %c0_i32 = arith.constant 0 : i32
    %c0_i32_0 = arith.constant 0 : i32
    %c0_i32_1 = arith.constant 0 : i32
    return %c0_i32, %c0_i32_0 : i32, i32
  }
  func.func @transform_5(%arg0: i32) -> (i32, i32) {
    %c0_i32 = arith.constant 0 : i32
    %c0_i32_0 = arith.constant 0 : i32
    %c0_i32_1 = arith.constant 0 : i32
    return %c0_i32, %c0_i32_0 : i32, i32
  }
  func.func @transform_6(%arg0: i32) -> (i32, i32) {
    %c0_i32 = arith.constant 0 : i32
    %c0_i32_0 = arith.constant 0 : i32
    %c0_i32_1 = arith.constant 0 : i32
    return %c0_i32, %c0_i32_0 : i32, i32
  }
  func.func @transform_7(%arg0: i32) -> (i32, i32) {
    %c0_i32 = arith.constant 0 : i32
    %c0_i32_0 = arith.constant 0 : i32
    return %arg0, %c0_i32 : i32, i32
  }
}

module attributes {stable_mosaic.version = 11 : i64} {
  func.func @kernel(%arg0: i32, %arg1: memref<8x16xf32, #tpu.memory_space<vmem>>, %arg2: memref<16x128xbf16, #tpu.memory_space<vmem>>, %arg3: memref<1x128xf32, #tpu.memory_space<vmem>>, %arg4: memref<128x128xbf16, #tpu.memory_space<vmem>>, %arg5: memref<1x128xf32, #tpu.memory_space<vmem>>, %arg6: memref<128x128xbf16, #tpu.memory_space<vmem>>, %arg7: memref<1x128xf32, #tpu.memory_space<vmem>>, %arg8: memref<8x128xf32, #tpu.memory_space<vmem>>) attributes {dimension_semantics = [#tpu.dimension_semantics<parallel>], iteration_bounds = array<i64: 1>, scalar_prefetch = 0 : i64, scratch_operands = 0 : i64, tpu.core_type = #tpu.core_type<tc>, window_params = [{transform_indices = @transform_0, window_bounds = array<i64: 8, 16>}, {pipeline_mode = #tpu.pipeline_mode<synchronous>, transform_indices = @transform_1, window_bounds = array<i64: 16, 128>}, {pipeline_mode = #tpu.pipeline_mode<synchronous>, transform_indices = @transform_2, window_bounds = array<i64: 1, 128>}, {pipeline_mode = #tpu.pipeline_mode<synchronous>, transform_indices = @transform_3, window_bounds = array<i64: 128, 128>}, {pipeline_mode = #tpu.pipeline_mode<synchronous>, transform_indices = @transform_4, window_bounds = array<i64: 1, 128>}, {pipeline_mode = #tpu.pipeline_mode<synchronous>, transform_indices = @transform_5, window_bounds = array<i64: 128, 128>}, {pipeline_mode = #tpu.pipeline_mode<synchronous>, transform_indices = @transform_6, window_bounds = array<i64: 1, 128>}, {transform_indices = @transform_7, window_bounds = array<i64: 8, 128>}]} {
    %c0 = arith.constant 0 : index
    %c0_0 = arith.constant 0 : index
    %0 = vector.load %arg1[%c0, %c0_0] : memref<8x16xf32, #tpu.memory_space<vmem>>, vector<8x16xf32>
    %1 = arith.truncf %0 : vector<8x16xf32> to vector<8x16xbf16>
    %c0_1 = arith.constant 0 : index
    %c0_2 = arith.constant 0 : index
    %2 = vector.load %arg2[%c0_1, %c0_2] : memref<16x128xbf16, #tpu.memory_space<vmem>>, vector<16x128xbf16>
    %cst = arith.constant dense<0.000000e+00> : vector<8x128xf32>
    %3 = tpu.matmul %1, %2, %cst {dimension_numbers = #tpu.dot_dimension_numbers<[1], [0], [0], [1], [0, 0, 1, 1], [], []>} : vector<8x16xbf16>, vector<16x128xbf16>, vector<8x128xf32> -> vector<8x128xf32>
    %c0_3 = arith.constant 0 : index
    %c0_4 = arith.constant 0 : index
    %4 = vector.load %arg3[%c0_3, %c0_4] : memref<1x128xf32, #tpu.memory_space<vmem>>, vector<1x128xf32>
    %5 = vector.broadcast %4 : vector<1x128xf32> to vector<8x128xf32>
    %6 = arith.addf %3, %5 : vector<8x128xf32>
    %7 = math.tanh %6 : vector<8x128xf32>
    %8 = arith.truncf %7 : vector<8x128xf32> to vector<8x128xbf16>
    %c0_5 = arith.constant 0 : index
    %c0_6 = arith.constant 0 : index
    %9 = vector.load %arg4[%c0_5, %c0_6] : memref<128x128xbf16, #tpu.memory_space<vmem>>, vector<128x128xbf16>
    %cst_7 = arith.constant dense<0.000000e+00> : vector<8x128xf32>
    %10 = tpu.matmul %8, %9, %cst_7 {dimension_numbers = #tpu.dot_dimension_numbers<[1], [0], [0], [1], [0, 0, 1, 1], [], []>} : vector<8x128xbf16>, vector<128x128xbf16>, vector<8x128xf32> -> vector<8x128xf32>
    %c0_8 = arith.constant 0 : index
    %c0_9 = arith.constant 0 : index
    %11 = vector.load %arg5[%c0_8, %c0_9] : memref<1x128xf32, #tpu.memory_space<vmem>>, vector<1x128xf32>
    %12 = vector.broadcast %11 : vector<1x128xf32> to vector<8x128xf32>
    %13 = arith.addf %10, %12 : vector<8x128xf32>
    %14 = math.tanh %13 : vector<8x128xf32>
    %15 = arith.truncf %14 : vector<8x128xf32> to vector<8x128xbf16>
    %c0_10 = arith.constant 0 : index
    %c0_11 = arith.constant 0 : index
    %16 = vector.load %arg6[%c0_10, %c0_11] : memref<128x128xbf16, #tpu.memory_space<vmem>>, vector<128x128xbf16>
    %cst_12 = arith.constant dense<0.000000e+00> : vector<8x128xf32>
    %17 = tpu.matmul %15, %16, %cst_12 {dimension_numbers = #tpu.dot_dimension_numbers<[1], [0], [0], [1], [0, 0, 1, 1], [], []>} : vector<8x128xbf16>, vector<128x128xbf16>, vector<8x128xf32> -> vector<8x128xf32>
    %c0_13 = arith.constant 0 : index
    %c0_14 = arith.constant 0 : index
    %18 = vector.load %arg7[%c0_13, %c0_14] : memref<1x128xf32, #tpu.memory_space<vmem>>, vector<1x128xf32>
    %19 = vector.broadcast %18 : vector<1x128xf32> to vector<8x128xf32>
    %20 = arith.addf %17, %19 : vector<8x128xf32>
    %c0_15 = arith.constant 0 : index
    %c0_16 = arith.constant 0 : index
    %21 = vector.load %arg8[%c0_15, %c0_16] : memref<8x128xf32, #tpu.memory_space<vmem>>, vector<8x128xf32>
    tpu.vector_store %arg8[%c0_15, %c0_16], %20 {strides = array<i32>} : memref<8x128xf32, #tpu.memory_space<vmem>>, vector<8x128xf32>,
    return
  }
  func.func @transform_0(%arg0: i32) -> (i32, i32) {
    %c0_i32 = arith.constant 0 : i32
    %c0_i32_0 = arith.constant 0 : i32
    return %arg0, %c0_i32 : i32, i32
  }
  func.func @transform_1(%arg0: i32) -> (i32, i32) {
    %c0_i32 = arith.constant 0 : i32
    %c0_i32_0 = arith.constant 0 : i32
    %c0_i32_1 = arith.constant 0 : i32
    return %c0_i32, %c0_i32_0 : i32, i32
  }
  func.func @transform_2(%arg0: i32) -> (i32, i32) {
    %c0_i32 = arith.constant 0 : i32
    %c0_i32_0 = arith.constant 0 : i32
    %c0_i32_1 = arith.constant 0 : i32
    return %c0_i32, %c0_i32_0 : i32, i32
  }
  func.func @transform_3(%arg0: i32) -> (i32, i32) {
    %c0_i32 = arith.constant 0 : i32
    %c0_i32_0 = arith.constant 0 : i32
    %c0_i32_1 = arith.constant 0 : i32
    return %c0_i32, %c0_i32_0 : i32, i32
  }
  func.func @transform_4(%arg0: i32) -> (i32, i32) {
    %c0_i32 = arith.constant 0 : i32
    %c0_i32_0 = arith.constant 0 : i32
    %c0_i32_1 = arith.constant 0 : i32
    return %c0_i32, %c0_i32_0 : i32, i32
  }
  func.func @transform_5(%arg0: i32) -> (i32, i32) {
    %c0_i32 = arith.constant 0 : i32
    %c0_i32_0 = arith.constant 0 : i32
    %c0_i32_1 = arith.constant 0 : i32
    return %c0_i32, %c0_i32_0 : i32, i32
  }
  func.func @transform_6(%arg0: i32) -> (i32, i32) {
    %c0_i32 = arith.constant 0 : i32
    %c0_i32_0 = arith.constant 0 : i32
    %c0_i32_1 = arith.constant 0 : i32
    return %c0_i32, %c0_i32_0 : i32, i32
  }
  func.func @transform_7(%arg0: i32) -> (i32, i32) {
    %c0_i32 = arith.constant 0 : i32
    %c0_i32_0 = arith.constant 0 : i32
    return %arg0, %c0_i32 : i32, i32
  }
}

</mosaic_0001>

<llo_original>
// kernel: tpu_custom_call.1
$region0: #{tpu_custom_call.1}
  #allocation0 [shape = 'u32[]', space=smem, size = 0x4, offset = 0x4, fixed_abs, tag = 'smem constant byte address 0x4 - core index']
  #allocation1 [shape = 'u32[72,128]{1,0:T(1,128)}', space=vmem, size = 0x9000, scoped, tag = 'internal scratch']
  %s0 = inlined_call_operand.hbm [shape: f32[8,16], index: 0, kind: input, shape index: {}]
  %s1 = inlined_call_operand.hbm [shape: bf16[16,128], index: 1, kind: input, shape index: {}]
  %s2 = inlined_call_operand.vmem [shape: f32[1,128], index: 2, kind: input, shape index: {}]
  %s3 = inlined_call_operand.hbm [shape: bf16[128,128], index: 3, kind: input, shape index: {}]
  %s4 = inlined_call_operand.vmem [shape: f32[1,128], index: 4, kind: input, shape index: {}]
  %s5 = inlined_call_operand.hbm [shape: bf16[128,128], index: 5, kind: input, shape index: {}]
  %s6 = inlined_call_operand.vmem [shape: f32[1,128], index: 6, kind: input, shape index: {}]
  %s7 = inlined_call_operand.hbm [shape: f32[8,128], index: 7, kind: output, shape index: {}]
  %s8 = sld [smem:[#allocation0]]
  $region54: #{tpu_custom_call.1} parent=0
    _
  %s10 = ssub.s32 1, %s8
  %s11 = scalar_select 0, %s10, %s8
  $region1: #{tpu_custom_call.1} parent=0
    #allocation2 [shape = 'u8[4096]{0}', space=vmem, size = 0x1000, scoped, tag = 'input window, operand 0, single buffered']
    #allocation3 [shape = 's32[1]{0}', space=sflag, size = 0x4, scoped, tag = 'scoped memory for tpu_custom_call.1']
    #allocation4 [shape = 's32[1]{0}', space=sflag, size = 0x4, scoped, tag = 'scoped memory for tpu_custom_call.1']
    #allocation5 [shape = 'u8[4096]{0}', space=vmem, size = 0x1000, scoped, tag = 'input window, operand 1, single buffered']
    #allocation6 [shape = 's32[1]{0}', space=sflag, size = 0x4, scoped, tag = 'scoped memory for tpu_custom_call.1']
    #allocation7 [shape = 'u8[32768]{0}', space=vmem, size = 0x8000, scoped, tag = 'input window, operand 3, single buffered']
    #allocation8 [shape = 'u8[32768]{0}', space=vmem, size = 0x8000, scoped, tag = 'input window, operand 5, single buffered']
    #allocation9 [shape = 's32[1]{0}', space=sflag, size = 0x4, scoped, tag = 'scoped memory for tpu_custom_call.1']
    #allocation10 [shape = 'u8[4096]{0}', space=vmem, size = 0x1000, scoped, tag = 'output window, operand 0, single buffered']
    %12 = vsyncpa [#allocation3], 0
    %13 = vsyncpa [#allocation6], 0
    %14 = vsyncpa [#allocation9], 0
    %15 = vsyncpa [#allocation4], 0
    // Predicated region
    $region2: #{tpu_custom_call.1} parent=1 // pred_check
      _
    $region3: #{tpu_custom_call.1} parent=1 // pred_check_branch
      %17 = sbr.rel (0) target = $region5
    $region4: #{tpu_custom_call.1} parent=1 // pred_region
      %19 = vsyncadd [#allocation3], 0
      %s21 = sshll.u32 %s0, 4
      %s22 = int_to_ptr.hbm [resolvable:$true] %s21
      %s23 = sshll.u32 [#allocation2], 4
      %s24 = int_to_ptr.vmem [resolvable:$true] %s23
      %26 = dma.hbm_to_vmem [thread:$0]  %s22, 128, %s24, [#allocation3]
    $region5: #{tpu_custom_call.1} parent=1 // pred_fallthru
      _
    // Predicated region
    $region6: #{tpu_custom_call.1} parent=1 // pred_check
      _
    $region7: #{tpu_custom_call.1} parent=1 // pred_check_branch
      %28 = sbr.rel (0) target = $region9
    $region8: #{tpu_custom_call.1} parent=1 // pred_region
      %30 = vsyncadd [#allocation6], 0
      %s31 = sshll.u32 %s1, 4
      %s32 = int_to_ptr.hbm [resolvable:$true] %s31
      %s33 = sshll.u32 [#allocation5], 4
      %s34 = int_to_ptr.vmem [resolvable:$true] %s33
      %39 = dma.hbm_to_vmem [thread:$0]  %s32, 128, %s34, [#allocation6], 64, 64, 4
    $region9: #{tpu_custom_call.1} parent=1 // pred_fallthru
      _
    // Predicated region
    $region10: #{tpu_custom_call.1} parent=1 // pred_check
      _
    $region11: #{tpu_custom_call.1} parent=1 // pred_check_branch
      %41 = sbr.rel (0) target = $region13
    $region12: #{tpu_custom_call.1} parent=1 // pred_region
      _
    $region13: #{tpu_custom_call.1} parent=1 // pred_fallthru
      _
    // Predicated region
    $region14: #{tpu_custom_call.1} parent=1 // pred_check
      _
    $region15: #{tpu_custom_call.1} parent=1 // pred_check_branch
      %43 = sbr.rel (0) target = $region17
    $region16: #{tpu_custom_call.1} parent=1 // pred_region
      %45 = vsyncadd [#allocation6], 0
      %s46 = sshll.u32 %s3, 4
      %s47 = int_to_ptr.hbm [resolvable:$true] %s46
      %s48 = sshll.u32 [#allocation7], 4
      %s49 = int_to_ptr.vmem [resolvable:$true] %s48
      %54 = dma.hbm_to_vmem [thread:$0]  %s47, 1024, %s49, [#allocation6], 64, 64, 4
    $region17: #{tpu_custom_call.1} parent=1 // pred_fallthru
      _
    // Predicated region
    $region18: #{tpu_custom_call.1} parent=1 // pred_check
      _
    $region19: #{tpu_custom_call.1} parent=1 // pred_check_branch
      %56 = sbr.rel (0) target = $region21
    $region20: #{tpu_custom_call.1} parent=1 // pred_region
      _
    $region21: #{tpu_custom_call.1} parent=1 // pred_fallthru
      _
    // Predicated region
    $region22: #{tpu_custom_call.1} parent=1 // pred_check
      _
    $region23: #{tpu_custom_call.1} parent=1 // pred_check_branch
      %58 = sbr.rel (0) target = $region25
    $region24: #{tpu_custom_call.1} parent=1 // pred_region
      %60 = vsyncadd [#allocation9], 0
      %s61 = sshll.u32 %s5, 4
      %s62 = int_to_ptr.hbm [resolvable:$true] %s61
      %s63 = sshll.u32 [#allocation8], 4
      %s64 = int_to_ptr.vmem [resolvable:$true] %s63
      %69 = dma.hbm_to_vmem [thread:$0]  %s62, 1024, %s64, [#allocation9], 64, 64, 4
    $region25: #{tpu_custom_call.1} parent=1 // pred_fallthru
      _
    // Predicated region
    $region26: #{tpu_custom_call.1} parent=1 // pred_check
      _
    $region27: #{tpu_custom_call.1} parent=1 // pred_check_branch
      %71 = sbr.rel (0) target = $region29
    $region28: #{tpu_custom_call.1} parent=1 // pred_region
      _
    $region29: #{tpu_custom_call.1} parent=1 // pred_fallthru
      _
    // Predicated region
    $region30: #{tpu_custom_call.1} parent=1 // pred_check
      _
    $region31: #{tpu_custom_call.1} parent=1 // pred_check_branch
      %73 = sbr.rel (0) target = $region33
    $region32: #{tpu_custom_call.1} parent=1 // pred_region
      %75 = dma.done [#allocation3], 128
    $region33: #{tpu_custom_call.1} parent=1 // pred_fallthru
      _
    // Predicated region
    $region34: #{tpu_custom_call.1} parent=1 // pred_check
      _
    $region35: #{tpu_custom_call.1} parent=1 // pred_check_branch
      %77 = sbr.rel (0) target = $region37
    $region36: #{tpu_custom_call.1} parent=1 // pred_region
      %79 = dma.done [#allocation6], 128
    $region37: #{tpu_custom_call.1} parent=1 // pred_fallthru
      _
    // Predicated region
    $region38: #{tpu_custom_call.1} parent=1 // pred_check
      _
    $region39: #{tpu_custom_call.1} parent=1 // pred_check_branch
      %81 = sbr.rel (0) target = $region41
    $region40: #{tpu_custom_call.1} parent=1 // pred_region
      %83 = dma.done [#allocation6], 1024
    $region41: #{tpu_custom_call.1} parent=1 // pred_fallthru
      _
    // Predicated region
    $region42: #{tpu_custom_call.1} parent=1 // pred_check
      _
    $region43: #{tpu_custom_call.1} parent=1 // pred_check_branch
      %85 = sbr.rel (0) target = $region45
    $region44: #{tpu_custom_call.1} parent=1 // pred_region
      %87 = dma.done [#allocation9], 1024
    $region45: #{tpu_custom_call.1} parent=1 // pred_fallthru
      _
    %v89 = vld [vmem:[#allocation2] sm:$0xff]
    %v90 = vpack.c.bf16 %v89, %v89
    %v91 = vld [vmem:[#allocation5] sm:$0xf]
    %v92 = vld [vmem:[#allocation5 + $0x4] sm:$0xf]
    %v93 = vld [vmem:[%s2] sm:$0x1]
    %v95 = vperm.slane %v93, 0
    %v99 = vunpack.c.l.b16 %v91
    %v100 = vunpack.c.l.b16 %v92
    %v101 = vpack.c.b16 %v100, %v99
    %vm103 = vcmask 130048
    %v105 = vsel %vm103, %v90, 0
    %107 = vmatpush.bf16.msra.mxu0 0
    %108 = vmatpush.bf16.msra.mxu0 0
    %109 = vmatpush.bf16.msra.mxu0 0
    %110 = vmatpush.bf16.msra.mxu0 0
    %111 = vmatpush.bf16.msra.mxu0 0
    %112 = vmatpush.bf16.msra.mxu0 0
    %113 = vmatpush.bf16.msra.mxu0 0
    %114 = vmatpush.bf16.msra.mxu0 %v101
    %115 = vmatmul.bf16.gmra.mxu0 %v105
    %v116 = vpop.f32.mrf.mxu0
    %v117 = vadd.f32 %v95, %v116
    %v118 = vpop.f32.mrf.mxu0
    %119 = vdwg.mxu0
    %v120 = vtanh.pop %v117
    %v121 = vpack.c.bf16 %v120, %v120
    %v122 = vld [vmem:[#allocation7] sm:$0xf]
    %v123 = vld [vmem:[#allocation7 + $0x4] sm:$0xf]
    %v124 = vld [vmem:[#allocation7 + $0x8] sm:$0xf]
    %v125 = vld [vmem:[#allocation7 + $0xc] sm:$0xf]
    %v126 = vld [vmem:[#allocation7 + $0x10] sm:$0xf]
    %v127 = vld [vmem:[#allocation7 + $0x14] sm:$0xf]
    %v128 = vld [vmem:[#allocation7 + $0x18] sm:$0xf]
    %v129 = vld [vmem:[#allocation7 + $0x1c] sm:$0xf]
    %v130 = vld [vmem:[#allocation7 + $0x20] sm:$0xf]
    %v131 = vld [vmem:[#allocation7 + $0x24] sm:$0xf]
    %v132 = vld [vmem:[#allocation7 + $0x28] sm:$0xf]
    %v133 = vld [vmem:[#allocation7 + $0x2c] sm:$0xf]
    %v134 = vld [vmem:[#allocation7 + $0x30] sm:$0xf]
    %v135 = vld [vmem:[#allocation7 + $0x34] sm:$0xf]
    %v136 = vld [vmem:[#allocation7 + $0x38] sm:$0xf]
    %v137 = vld [vmem:[#allocation7 + $0x3c] sm:$0xf]
    %v138 = vld [vmem:[%s4] sm:$0x1]
    %v140 = vperm.slane %v138, 0
    %v158 = vunpack.c.l.b16 %v122
    %v159 = vunpack.c.l.b16 %v123
    %v160 = vunpack.c.l.b16 %v124
    %v161 = vunpack.c.l.b16 %v125
    %v162 = vunpack.c.l.b16 %v126
    %v163 = vunpack.c.l.b16 %v127
    %v164 = vunpack.c.l.b16 %v128
    %v165 = vunpack.c.l.b16 %v129
    %v166 = vunpack.c.l.b16 %v130
    %v167 = vunpack.c.l.b16 %v131
    %v168 = vunpack.c.l.b16 %v132
    %v169 = vunpack.c.l.b16 %v133
    %v170 = vunpack.c.l.b16 %v134
    %v171 = vunpack.c.l.b16 %v135
    %v172 = vunpack.c.l.b16 %v136
    %v173 = vunpack.c.l.b16 %v137
    %v174 = vpack.c.b16 %v159, %v158
    %v175 = vpack.c.b16 %v161, %v160
    %v176 = vpack.c.b16 %v163, %v162
    %v177 = vpack.c.b16 %v165, %v164
    %v178 = vpack.c.b16 %v167, %v166
    %v179 = vpack.c.b16 %v169, %v168
    %v180 = vpack.c.b16 %v171, %v170
    %v181 = vpack.c.b16 %v173, %v172
    %190 = vmatpush.bf16.msra.mxu0 %v181
    %191 = vmatpush.bf16.msra.mxu0 %v180
    %192 = vmatpush.bf16.msra.mxu0 %v179
    %193 = vmatpush.bf16.msra.mxu0 %v178
    %194 = vmatpush.bf16.msra.mxu0 %v177
    %195 = vmatpush.bf16.msra.mxu0 %v176
    %196 = vmatpush.bf16.msra.mxu0 %v175
    %197 = vmatpush.bf16.msra.mxu0 %v174
    %198 = vmatmul.bf16.gmra.mxu0 %v121
    %v199 = vpop.f32.mrf.mxu0
    %v200 = vadd.f32 %v140, %v199
    %v201 = vpop.f32.mrf.mxu0
    %202 = vdwg.mxu0
    %v203 = vtanh.pop %v200
    %v204 = vpack.c.bf16 %v203, %v203
    %v205 = vld [vmem:[#allocation8] sm:$0xf]
    %v206 = vld [vmem:[#allocation8 + $0x4] sm:$0xf]
    %v207 = vld [vmem:[#allocation8 + $0x8] sm:$0xf]
    %v208 = vld [vmem:[#allocation8 + $0xc] sm:$0xf]
    %v209 = vld [vmem:[#allocation8 + $0x10] sm:$0xf]
    %v210 = vld [vmem:[#allocation8 + $0x14] sm:$0xf]
    %v211 = vld [vmem:[#allocation8 + $0x18] sm:$0xf]
    %v212 = vld [vmem:[#allocation8 + $0x1c] sm:$0xf]
    %v213 = vld [vmem:[#allocation8 + $0x20] sm:$0xf]
    %v214 = vld [vmem:[#allocation8 + $0x24] sm:$0xf]
    %v215 = vld [vmem:[#allocation8 + $0x28] sm:$0xf]
    %v216 = vld [vmem:[#allocation8 + $0x2c] sm:$0xf]
    %v217 = vld [vmem:[#allocation8 + $0x30] sm:$0xf]
    %v218 = vld [vmem:[#allocation8 + $0x34] sm:$0xf]
    %v219 = vld [vmem:[#allocation8 + $0x38] sm:$0xf]
    %v220 = vld [vmem:[#allocation8 + $0x3c] sm:$0xf]
    %v221 = vld [vmem:[%s6] sm:$0x1]
    %v223 = vperm.slane %v221, 0
    %v241 = vunpack.c.l.b16 %v205
    %v242 = vunpack.c.l.b16 %v206
    %v243 = vunpack.c.l.b16 %v207
    %v244 = vunpack.c.l.b16 %v208
    %v245 = vunpack.c.l.b16 %v209
    %v246 = vunpack.c.l.b16 %v210
    %v247 = vunpack.c.l.b16 %v211
    %v248 = vunpack.c.l.b16 %v212
    %v249 = vunpack.c.l.b16 %v213
    %v250 = vunpack.c.l.b16 %v214
    %v251 = vunpack.c.l.b16 %v215
    %v252 = vunpack.c.l.b16 %v216
    %v253 = vunpack.c.l.b16 %v217
    %v254 = vunpack.c.l.b16 %v218
    %v255 = vunpack.c.l.b16 %v219
    %v256 = vunpack.c.l.b16 %v220
    %v257 = vpack.c.b16 %v242, %v241
    %v258 = vpack.c.b16 %v244, %v243
    %v259 = vpack.c.b16 %v246, %v245
    %v260 = vpack.c.b16 %v248, %v247
    %v261 = vpack.c.b16 %v250, %v249
    %v262 = vpack.c.b16 %v252, %v251
    %v263 = vpack.c.b16 %v254, %v253
    %v264 = vpack.c.b16 %v256, %v255
    %273 = vmatpush.bf16.msra.mxu0 %v264
    %274 = vmatpush.bf16.msra.mxu0 %v263
    %275 = vmatpush.bf16.msra.mxu0 %v262
    %276 = vmatpush.bf16.msra.mxu0 %v261
    %277 = vmatpush.bf16.msra.mxu0 %v260
    %278 = vmatpush.bf16.msra.mxu0 %v259
    %279 = vmatpush.bf16.msra.mxu0 %v258
    %280 = vmatpush.bf16.msra.mxu0 %v257
    %281 = vmatmul.bf16.gmra.mxu0 %v204
    %v282 = vpop.f32.mrf.mxu0
    %v283 = vadd.f32 %v223, %v282
    %v284 = vpop.f32.mrf.mxu0
    %285 = vdwg.mxu0
    %286 = vst [vmem:[#allocation10] sm:$0xff] %v283
    // Predicated region
    $region46: #{tpu_custom_call.1} parent=1 // pred_check
      _
    $region47: #{tpu_custom_call.1} parent=1 // pred_check_branch
      %288 = sbr.rel (0) target = $region49
    $region48: #{tpu_custom_call.1} parent=1 // pred_region
      %290 = vsyncadd [#allocation4], 0
      %s292 = sshll.u32 [#allocation10], 4
      %s293 = int_to_ptr.vmem [resolvable:$true] %s292
      %s294 = sshll.u32 %s7, 4
      %s295 = int_to_ptr.hbm [resolvable:$true] %s294
      %297 = dma.vmem_to_hbm [thread:$0]  %s293, 128, %s295, [#allocation4]
    $region49: #{tpu_custom_call.1} parent=1 // pred_fallthru
      _
    // Predicated region
    $region50: #{tpu_custom_call.1} parent=1 // pred_check
      _
    $region51: #{tpu_custom_call.1} parent=1 // pred_check_branch
      %299 = sbr.rel (0) target = $region53
    $region52: #{tpu_custom_call.1} parent=1 // pred_region
      %301 = dma.done [#allocation4], 128
    $region53: #{tpu_custom_call.1} parent=1 // pred_fallthru
      _
    %302 = vsyncpa [#allocation3], 1
    %303 = vsyncpa [#allocation6], 1
    %304 = vsyncpa [#allocation9], 1
    %305 = vsyncpa [#allocation4], 1

// kernel: tpu_custom_call.1
$region0: #{tpu_custom_call.1}
  #allocation0 [shape = 'u32[]', space=smem, size = 0x4, offset = 0x4, fixed_abs, tag = 'smem constant byte address 0x4 - core index']
  #allocation1 [shape = 'u32[72,128]{1,0:T(1,128)}', space=vmem, size = 0x9000, scoped, tag = 'internal scratch']
  %s0 = inlined_call_operand.hbm [shape: f32[8,16], index: 0, kind: input, shape index: {}]
  %s1 = inlined_call_operand.hbm [shape: bf16[16,128], index: 1, kind: input, shape index: {}]
  %s2 = inlined_call_operand.vmem [shape: f32[1,128], index: 2, kind: input, shape index: {}]
  %s3 = inlined_call_operand.hbm [shape: bf16[128,128], index: 3, kind: input, shape index: {}]
  %s4 = inlined_call_operand.vmem [shape: f32[1,128], index: 4, kind: input, shape index: {}]
  %s5 = inlined_call_operand.hbm [shape: bf16[128,128], index: 5, kind: input, shape index: {}]
  %s6 = inlined_call_operand.vmem [shape: f32[1,128], index: 6, kind: input, shape index: {}]
  %s7 = inlined_call_operand.hbm [shape: f32[8,128], index: 7, kind: output, shape index: {}]
  %s8 = sld [smem:[#allocation0]]
  $region54: #{tpu_custom_call.1} parent=0
    _
  %s10 = ssub.s32 1, %s8
  %s11 = scalar_select 0, %s10, %s8
  $region1: #{tpu_custom_call.1} parent=0
    #allocation2 [shape = 'u8[4096]{0}', space=vmem, size = 0x1000, scoped, tag = 'input window, operand 0, single buffered']
    #allocation3 [shape = 's32[1]{0}', space=sflag, size = 0x4, scoped, tag = 'scoped memory for tpu_custom_call.1']
    #allocation4 [shape = 's32[1]{0}', space=sflag, size = 0x4, scoped, tag = 'scoped memory for tpu_custom_call.1']
    #allocation5 [shape = 'u8[4096]{0}', space=vmem, size = 0x1000, scoped, tag = 'input window, operand 1, single buffered']
    #allocation6 [shape = 's32[1]{0}', space=sflag, size = 0x4, scoped, tag = 'scoped memory for tpu_custom_call.1']
    #allocation7 [shape = 'u8[32768]{0}', space=vmem, size = 0x8000, scoped, tag = 'input window, operand 3, single buffered']
    #allocation8 [shape = 'u8[32768]{0}', space=vmem, size = 0x8000, scoped, tag = 'input window, operand 5, single buffered']
    #allocation9 [shape = 's32[1]{0}', space=sflag, size = 0x4, scoped, tag = 'scoped memory for tpu_custom_call.1']
    #allocation10 [shape = 'u8[4096]{0}', space=vmem, size = 0x1000, scoped, tag = 'output window, operand 0, single buffered']
    %12 = vsyncpa [#allocation3], 0
    %13 = vsyncpa [#allocation6], 0
    %14 = vsyncpa [#allocation9], 0
    %15 = vsyncpa [#allocation4], 0
    // Predicated region
    $region2: #{tpu_custom_call.1} parent=1 // pred_check
      _
    $region3: #{tpu_custom_call.1} parent=1 // pred_check_branch
      %17 = sbr.rel (0) target = $region5
    $region4: #{tpu_custom_call.1} parent=1 // pred_region
      %19 = vsyncadd [#allocation3], 0
      %s21 = sshll.u32 %s0, 4
      %s22 = int_to_ptr.hbm [resolvable:$true] %s21
      %s23 = sshll.u32 [#allocation2], 4
      %s24 = int_to_ptr.vmem [resolvable:$true] %s23
      %26 = dma.hbm_to_vmem [thread:$0]  %s22, 128, %s24, [#allocation3]
    $region5: #{tpu_custom_call.1} parent=1 // pred_fallthru
      _
    // Predicated region
    $region6: #{tpu_custom_call.1} parent=1 // pred_check
      _
    $region7: #{tpu_custom_call.1} parent=1 // pred_check_branch
      %28 = sbr.rel (0) target = $region9
    $region8: #{tpu_custom_call.1} parent=1 // pred_region
      %30 = vsyncadd [#allocation6], 0
      %s31 = sshll.u32 %s1, 4
      %s32 = int_to_ptr.hbm [resolvable:$true] %s31
      %s33 = sshll.u32 [#allocation5], 4
      %s34 = int_to_ptr.vmem [resolvable:$true] %s33
      %39 = dma.hbm_to_vmem [thread:$0]  %s32, 128, %s34, [#allocation6], 64, 64, 4
    $region9: #{tpu_custom_call.1} parent=1 // pred_fallthru
      _
    // Predicated region
    $region10: #{tpu_custom_call.1} parent=1 // pred_check
      _
    $region11: #{tpu_custom_call.1} parent=1 // pred_check_branch
      %41 = sbr.rel (0) target = $region13
    $region12: #{tpu_custom_call.1} parent=1 // pred_region
      _
    $region13: #{tpu_custom_call.1} parent=1 // pred_fallthru
      _
    // Predicated region
    $region14: #{tpu_custom_call.1} parent=1 // pred_check
      _
    $region15: #{tpu_custom_call.1} parent=1 // pred_check_branch
      %43 = sbr.rel (0) target = $region17
    $region16: #{tpu_custom_call.1} parent=1 // pred_region
      %45 = vsyncadd [#allocation6], 0
      %s46 = sshll.u32 %s3, 4
      %s47 = int_to_ptr.hbm [resolvable:$true] %s46
      %s48 = sshll.u32 [#allocation7], 4
      %s49 = int_to_ptr.vmem [resolvable:$true] %s48
      %54 = dma.hbm_to_vmem [thread:$0]  %s47, 1024, %s49, [#allocation6], 64, 64, 4
    $region17: #{tpu_custom_call.1} parent=1 // pred_fallthru
      _
    // Predicated region
    $region18: #{tpu_custom_call.1} parent=1 // pred_check
      _
    $region19: #{tpu_custom_call.1} parent=1 // pred_check_branch
      %56 = sbr.rel (0) target = $region21
    $region20: #{tpu_custom_call.1} parent=1 // pred_region
      _
    $region21: #{tpu_custom_call.1} parent=1 // pred_fallthru
      _
    // Predicated region
    $region22: #{tpu_custom_call.1} parent=1 // pred_check
      _
    $region23: #{tpu_custom_call.1} parent=1 // pred_check_branch
      %58 = sbr.rel (0) target = $region25
    $region24: #{tpu_custom_call.1} parent=1 // pred_region
      %60 = vsyncadd [#allocation9], 0
      %s61 = sshll.u32 %s5, 4
      %s62 = int_to_ptr.hbm [resolvable:$true] %s61
      %s63 = sshll.u32 [#allocation8], 4
      %s64 = int_to_ptr.vmem [resolvable:$true] %s63
      %69 = dma.hbm_to_vmem [thread:$0]  %s62, 1024, %s64, [#allocation9], 64, 64, 4
    $region25: #{tpu_custom_call.1} parent=1 // pred_fallthru
      _
    // Predicated region
    $region26: #{tpu_custom_call.1} parent=1 // pred_check
      _
    $region27: #{tpu_custom_call.1} parent=1 // pred_check_branch
      %71 = sbr.rel (0) target = $region29
    $region28: #{tpu_custom_call.1} parent=1 // pred_region
      _
    $region29: #{tpu_custom_call.1} parent=1 // pred_fallthru
      _
    // Predicated region
    $region30: #{tpu_custom_call.1} parent=1 // pred_check
      _
    $region31: #{tpu_custom_call.1} parent=1 // pred_check_branch
      %73 = sbr.rel (0) target = $region33
    $region32: #{tpu_custom_call.1} parent=1 // pred_region
      %75 = dma.done [#allocation3], 128
    $region33: #{tpu_custom_call.1} parent=1 // pred_fallthru
      _
    // Predicated region
    $region34: #{tpu_custom_call.1} parent=1 // pred_check
      _
    $region35: #{tpu_custom_call.1} parent=1 // pred_check_branch
      %77 = sbr.rel (0) target = $region37
    $region36: #{tpu_custom_call.1} parent=1 // pred_region
      %79 = dma.done [#allocation6], 128
    $region37: #{tpu_custom_call.1} parent=1 // pred_fallthru
      _
    // Predicated region
    $region38: #{tpu_custom_call.1} parent=1 // pred_check
      _
    $region39: #{tpu_custom_call.1} parent=1 // pred_check_branch
      %81 = sbr.rel (0) target = $region41
    $region40: #{tpu_custom_call.1} parent=1 // pred_region
      %83 = dma.done [#allocation6], 1024
    $region41: #{tpu_custom_call.1} parent=1 // pred_fallthru
      _
    // Predicated region
    $region42: #{tpu_custom_call.1} parent=1 // pred_check
      _
    $region43: #{tpu_custom_call.1} parent=1 // pred_check_branch
      %85 = sbr.rel (0) target = $region45
    $region44: #{tpu_custom_call.1} parent=1 // pred_region
      %87 = dma.done [#allocation9], 1024
    $region45: #{tpu_custom_call.1} parent=1 // pred_fallthru
      _
    %v89 = vld [vmem:[#allocation2] sm:$0xff]
    %v90 = vpack.c.bf16 %v89, %v89
    %v91 = vld [vmem:[#allocation5] sm:$0xf]
    %v92 = vld [vmem:[#allocation5 + $0x4] sm:$0xf]
    %v93 = vld [vmem:[%s2] sm:$0x1]
    %v95 = vperm.slane %v93, 0
    %v99 = vunpack.c.l.b16 %v91
    %v100 = vunpack.c.l.b16 %v92
    %v101 = vpack.c.b16 %v100, %v99
    %vm103 = vcmask 130048
    %v105 = vsel %vm103, %v90, 0
    %107 = vmatpush.bf16.msra.mxu0 0
    %108 = vmatpush.bf16.msra.mxu0 0
    %109 = vmatpush.bf16.msra.mxu0 0
    %110 = vmatpush.bf16.msra.mxu0 0
    %111 = vmatpush.bf16.msra.mxu0 0
    %112 = vmatpush.bf16.msra.mxu0 0
    %113 = vmatpush.bf16.msra.mxu0 0
    %114 = vmatpush.bf16.msra.mxu0 %v101
    %115 = vmatmul.bf16.gmra.mxu0 %v105
    %v116 = vpop.f32.mrf.mxu0
    %v117 = vadd.f32 %v95, %v116
    %v118 = vpop.f32.mrf.mxu0
    %119 = vdwg.mxu0
    %v120 = vtanh.pop %v117
    %v121 = vpack.c.bf16 %v120, %v120
    %v122 = vld [vmem:[#allocation7] sm:$0xf]
    %v123 = vld [vmem:[#allocation7 + $0x4] sm:$0xf]
    %v124 = vld [vmem:[#allocation7 + $0x8] sm:$0xf]
    %v125 = vld [vmem:[#allocation7 + $0xc] sm:$0xf]
    %v126 = vld [vmem:[#allocation7 + $0x10] sm:$0xf]
    %v127 = vld [vmem:[#allocation7 + $0x14] sm:$0xf]
    %v128 = vld [vmem:[#allocation7 + $0x18] sm:$0xf]
    %v129 = vld [vmem:[#allocation7 + $0x1c] sm:$0xf]
    %v130 = vld [vmem:[#allocation7 + $0x20] sm:$0xf]
    %v131 = vld [vmem:[#allocation7 + $0x24] sm:$0xf]
    %v132 = vld [vmem:[#allocation7 + $0x28] sm:$0xf]
    %v133 = vld [vmem:[#allocation7 + $0x2c] sm:$0xf]
    %v134 = vld [vmem:[#allocation7 + $0x30] sm:$0xf]
    %v135 = vld [vmem:[#allocation7 + $0x34] sm:$0xf]
    %v136 = vld [vmem:[#allocation7 + $0x38] sm:$0xf]
    %v137 = vld [vmem:[#allocation7 + $0x3c] sm:$0xf]
    %v138 = vld [vmem:[%s4] sm:$0x1]
    %v140 = vperm.slane %v138, 0
    %v158 = vunpack.c.l.b16 %v122
    %v159 = vunpack.c.l.b16 %v123
    %v160 = vunpack.c.l.b16 %v124
    %v161 = vunpack.c.l.b16 %v125
    %v162 = vunpack.c.l.b16 %v126
    %v163 = vunpack.c.l.b16 %v127
    %v164 = vunpack.c.l.b16 %v128
    %v165 = vunpack.c.l.b16 %v129
    %v166 = vunpack.c.l.b16 %v130
    %v167 = vunpack.c.l.b16 %v131
    %v168 = vunpack.c.l.b16 %v132
    %v169 = vunpack.c.l.b16 %v133
    %v170 = vunpack.c.l.b16 %v134
    %v171 = vunpack.c.l.b16 %v135
    %v172 = vunpack.c.l.b16 %v136
    %v173 = vunpack.c.l.b16 %v137
    %v174 = vpack.c.b16 %v159, %v158
    %v175 = vpack.c.b16 %v161, %v160
    %v176 = vpack.c.b16 %v163, %v162
    %v177 = vpack.c.b16 %v165, %v164
    %v178 = vpack.c.b16 %v167, %v166
    %v179 = vpack.c.b16 %v169, %v168
    %v180 = vpack.c.b16 %v171, %v170
    %v181 = vpack.c.b16 %v173, %v172
    %190 = vmatpush.bf16.msra.mxu0 %v181
    %191 = vmatpush.bf16.msra.mxu0 %v180
    %192 = vmatpush.bf16.msra.mxu0 %v179
    %193 = vmatpush.bf16.msra.mxu0 %v178
    %194 = vmatpush.bf16.msra.mxu0 %v177
    %195 = vmatpush.bf16.msra.mxu0 %v176
    %196 = vmatpush.bf16.msra.mxu0 %v175
    %197 = vmatpush.bf16.msra.mxu0 %v174
    %198 = vmatmul.bf16.gmra.mxu0 %v121
    %v199 = vpop.f32.mrf.mxu0
    %v200 = vadd.f32 %v140, %v199
    %v201 = vpop.f32.mrf.mxu0
    %202 = vdwg.mxu0
    %v203 = vtanh.pop %v200
    %v204 = vpack.c.bf16 %v203, %v203
    %v205 = vld [vmem:[#allocation8] sm:$0xf]
    %v206 = vld [vmem:[#allocation8 + $0x4] sm:$0xf]
    %v207 = vld [vmem:[#allocation8 + $0x8] sm:$0xf]
    %v208 = vld [vmem:[#allocation8 + $0xc] sm:$0xf]
    %v209 = vld [vmem:[#allocation8 + $0x10] sm:$0xf]
    %v210 = vld [vmem:[#allocation8 + $0x14] sm:$0xf]
    %v211 = vld [vmem:[#allocation8 + $0x18] sm:$0xf]
    %v212 = vld [vmem:[#allocation8 + $0x1c] sm:$0xf]
    %v213 = vld [vmem:[#allocation8 + $0x20] sm:$0xf]
    %v214 = vld [vmem:[#allocation8 + $0x24] sm:$0xf]
    %v215 = vld [vmem:[#allocation8 + $0x28] sm:$0xf]
    %v216 = vld [vmem:[#allocation8 + $0x2c] sm:$0xf]
    %v217 = vld [vmem:[#allocation8 + $0x30] sm:$0xf]
    %v218 = vld [vmem:[#allocation8 + $0x34] sm:$0xf]
    %v219 = vld [vmem:[#allocation8 + $0x38] sm:$0xf]
    %v220 = vld [vmem:[#allocation8 + $0x3c] sm:$0xf]
    %v221 = vld [vmem:[%s6] sm:$0x1]
    %v223 = vperm.slane %v221, 0
    %v241 = vunpack.c.l.b16 %v205
    %v242 = vunpack.c.l.b16 %v206
    %v243 = vunpack.c.l.b16 %v207
    %v244 = vunpack.c.l.b16 %v208
    %v245 = vunpack.c.l.b16 %v209
    %v246 = vunpack.c.l.b16 %v210
    %v247 = vunpack.c.l.b16 %v211
    %v248 = vunpack.c.l.b16 %v212
    %v249 = vunpack.c.l.b16 %v213
    %v250 = vunpack.c.l.b16 %v214
    %v251 = vunpack.c.l.b16 %v215
    %v252 = vunpack.c.l.b16 %v216
    %v253 = vunpack.c.l.b16 %v217
    %v254 = vunpack.c.l.b16 %v218
    %v255 = vunpack.c.l.b16 %v219
    %v256 = vunpack.c.l.b16 %v220
    %v257 = vpack.c.b16 %v242, %v241
    %v258 = vpack.c.b16 %v244, %v243
    %v259 = vpack.c.b16 %v246, %v245
    %v260 = vpack.c.b16 %v248, %v247
    %v261 = vpack.c.b16 %v250, %v249
    %v262 = vpack.c.b16 %v252, %v251
    %v263 = vpack.c.b16 %v254, %v253
    %v264 = vpack.c.b16 %v256, %v255
    %273 = vmatpush.bf16.msra.mxu0 %v264
    %274 = vmatpush.bf16.msra.mxu0 %v263
    %275 = vmatpush.bf16.msra.mxu0 %v262
    %276 = vmatpush.bf16.msra.mxu0 %v261
    %277 = vmatpush.bf16.msra.mxu0 %v260
    %278 = vmatpush.bf16.msra.mxu0 %v259
    %279 = vmatpush.bf16.msra.mxu0 %v258
    %280 = vmatpush.bf16.msra.mxu0 %v257
    %281 = vmatmul.bf16.gmra.mxu0 %v204
    %v282 = vpop.f32.mrf.mxu0
    %v283 = vadd.f32 %v223, %v282
    %v284 = vpop.f32.mrf.mxu0
    %285 = vdwg.mxu0
    %286 = vst [vmem:[#allocation10] sm:$0xff] %v283
    // Predicated region
    $region46: #{tpu_custom_call.1} parent=1 // pred_check
      _
    $region47: #{tpu_custom_call.1} parent=1 // pred_check_branch
      %288 = sbr.rel (0) target = $region49
    $region48: #{tpu_custom_call.1} parent=1 // pred_region
      %290 = vsyncadd [#allocation4], 0
      %s292 = sshll.u32 [#allocation10], 4
      %s293 = int_to_ptr.vmem [resolvable:$true] %s292
      %s294 = sshll.u32 %s7, 4
      %s295 = int_to_ptr.hbm [resolvable:$true] %s294
      %297 = dma.vmem_to_hbm [thread:$0]  %s293, 128, %s295, [#allocation4]
    $region49: #{tpu_custom_call.1} parent=1 // pred_fallthru
      _
    // Predicated region
    $region50: #{tpu_custom_call.1} parent=1 // pred_check
      _
    $region51: #{tpu_custom_call.1} parent=1 // pred_check_branch
      %299 = sbr.rel (0) target = $region53
    $region52: #{tpu_custom_call.1} parent=1 // pred_region
      %301 = dma.done [#allocation4], 128
    $region53: #{tpu_custom_call.1} parent=1 // pred_fallthru
      _
    %302 = vsyncpa [#allocation3], 1
    %303 = vsyncpa [#allocation6], 1
    %304 = vsyncpa [#allocation9], 1
    %305 = vsyncpa [#allocation4], 1

</llo_original>
